<compile_context>
chip_gen: v7x
topology: tpu7x:2x2x1
jax: 0.10.0
libtpu: 0.0.40
codegen_flags: <defaults>
</compile_context>

<pallas_src>
import jax
import jax.numpy as jnp
import numpy as np
from jax.experimental import pallas as pl
from jax.experimental.pallas import tpu as pltpu


# --------------------------- fused Pallas kernel ------------------------------

def _aff_kernel(x_ref, r_ref, wcat_ref, bcat_ref, w2cat_ref, bz_ref, o_ref):
    """One grid step = one batch chunk, native NCHW orientation.

    Blocks:
      x_ref, r_ref, o_ref : (NB, C, HW) float32   (lane dim = HW, multiple of 128)
      wcat  : (2*IC, C)  bf16  rows [0:IC] = BN-folded local conv1, rows [IC:] = global conv1
      bcat  : (2*IC, 1)  f32   matching first-layer biases (local half BN-folded)
      w2cat : (C, 2*IC)  bf16  cols [0:IC] = BN-folded local conv2, cols [IC:] = global conv2
      bz    : (C, 1)     f32   b2_local(folded) + b2_global  (z = xl + xg gets it once)
    """
    nb, _, hw = x_ref.shape
    ic = wcat_ref.shape[0] // 2
    inv_hw = 1.0 / hw                       # compile-time constant; no runtime divide

    wcat = wcat_ref[...]
    bcat = bcat_ref[...]
    w2cat = w2cat_ref[...]
    bz = bz_ref[...]

    for n in range(nb):                     # static loop over the images in this chunk
        x = x_ref[n]                        # (C, HW)
        res = r_ref[n]
        xa = x + res                        # fused add (VPU)

        # ---- fused first layer: one MXU dispatch covers local + global branches ----
        hcat = jnp.dot(wcat, xa.astype(jnp.bfloat16),
                       preferred_element_type=jnp.float32) + bcat          # (2IC, HW)

        # local branch: per-pixel ReLU
        hl = jnp.maximum(hcat[:ic], 0.0)                                    # (IC, HW)
        # global branch: pool(conv(xa)) == conv(pool(xa)) by linearity, then ReLU
        hg = jnp.maximum(jnp.sum(hcat[ic:], axis=1, keepdims=True) * inv_hw,
                         0.0)                                               # (IC, 1)

        # ---- fused second layer: z = W2l@hl + W2g@hg + (b2l + b2g), one dispatch ----
        h2 = jnp.concatenate(
            [hl, jnp.broadcast_to(hg, (ic, hw))], axis=0).astype(jnp.bfloat16)  # (2IC, HW)
        z = jnp.dot(w2cat, h2, preferred_element_type=jnp.float32) + bz         # (C, HW)

        # ---- sigmoid gate (EUP exp + EUP approx reciprocal) + blend epilogue ----
        wei = pl.reciprocal(1.0 + jnp.exp(-z), approx=True)
        o_ref[n] = 2.0 * (res + wei * (x - res))


# --------------------------- wrapper -------------------------------------------

def aff_forward(x_nchw, res_nchw, params, *, vmem_budget_bytes=12 << 20):
    """AFF forward. NCHW in / NCHW out; only free reshapes around the kernel."""
    N, C, H, W = x_nchw.shape
    HW = H * W

    x = x_nchw.reshape(N, C, HW)            # collapse trailing dims: free, no transpose
    r = res_nchw.reshape(N, C, HW)

    # Batch chunk NB: largest divisor of N whose x/res/out working set (double-
    # buffered f32) fits a conservative VMEM budget (guards v7x's 64 MiB / v5e's
    # 16 MiB scoped default at large H*W).
    bytes_per_img = 3 * 2 * C * HW * 4
    nb = 1
    for cand in range(1, N + 1):
        if N % cand == 0 and cand * bytes_per_img <= vmem_budget_bytes:
            nb = cand
    grid = (N // nb,)
    # TODO(synk): if a single image exceeds the VMEM budget (very large H*W), split
    # into a pooled-reduction pass + a pointwise pass instead of one per-image slab.

    slab = pl.BlockSpec((nb, C, HW), lambda i: (i, 0, 0))

    def wspec(arr):
        return pl.BlockSpec(arr.shape, lambda i: (0,) * arr.ndim)

    out = pl.pallas_call(
        _aff_kernel,
        grid=grid,
        in_specs=[slab, slab,
                  wspec(params["wcat"]), wspec(params["bcat"]),
                  wspec(params["w2cat"]), wspec(params["bz"])],
        out_specs=slab,
        out_shape=jax.ShapeDtypeStruct((N, C, HW), jnp.float32),
        compiler_params=pltpu.CompilerParams(
            dimension_semantics=("parallel",) if grid[0] > 1 else ("arbitrary",)),
    )(x, r, params["wcat"], params["bcat"], params["w2cat"], params["bz"])

    return out.reshape(N, C, H, W)          # free reshape back to NCHW


# --------------------------- parameters ----------------------------------------

def init_raw_params(key, channels=64, r=4):
    """PyTorch-style raw parameters (conv weights squeezed to 2-D (O, I), BN stats)."""
    assert channels % r == 0
    ic = channels // r
    ks = jax.random.split(key, 16)

    def nrm(k, shape, s=0.1):
        return jax.random.normal(k, shape, jnp.float32) * s

    def uni(k, shape):
        return jax.random.uniform(k, shape, jnp.float32, 0.5, 1.5)

    return dict(
        # local_att: conv1 (ic<-C) + BN(ic) + ReLU + conv2 (C<-ic) + BN(C)
        l_w1=nrm(ks[0], (ic, channels)), l_b1=nrm(ks[1], (ic,)),
        l_bn1=(uni(ks[2], (ic,)), nrm(ks[3], (ic,)), nrm(ks[4], (ic,)), uni(ks[5], (ic,))),
        l_w2=nrm(ks[6], (channels, ic)), l_b2=nrm(ks[7], (channels,)),
        l_bn2=(uni(ks[8], (channels,)), nrm(ks[9], (channels,)),
               nrm(ks[10], (channels,)), uni(ks[11], (channels,))),
        # global_att: avgpool + conv1 (ic<-C) + ReLU + conv2 (C<-ic), no BN
        g_w1=nrm(ks[12], (ic, channels)), g_b1=nrm(ks[13], (ic,)),
        g_w2=nrm(ks[14], (channels, ic)), g_b2=nrm(ks[15], (channels,)),
    )


def fold_params(raw, eps=1e-5):
    """Fold BN (inference) into conv weights/bias, fuse local+global weights, cast to bf16."""
    g1, be1, m1, v1 = raw["l_bn1"]
    s1 = g1 / jnp.sqrt(v1 + eps)
    g2, be2, m2, v2 = raw["l_bn2"]
    s2 = g2 / jnp.sqrt(v2 + eps)

    w1l = raw["l_w1"] * s1[:, None]                   # (IC, C)   BN1 folded
    b1l = s1 * (raw["l_b1"] - m1) + be1               # (IC,)
    w2l = raw["l_w2"] * s2[:, None]                   # (C, IC)   BN2 folded
    b2l = s2 * (raw["l_b2"] - m2) + be2               # (C,)

    return dict(
        wcat=jnp.concatenate([w1l, raw["g_w1"]], axis=0).astype(jnp.bfloat16),   # (2IC, C)
        bcat=jnp.concatenate([b1l, raw["g_b1"]]).reshape(-1, 1)
             .astype(jnp.float32),                                                # (2IC, 1)
        w2cat=jnp.concatenate([w2l, raw["g_w2"]], axis=1).astype(jnp.bfloat16),   # (C, 2IC)
        bz=(b2l + raw["g_b2"]).reshape(-1, 1).astype(jnp.float32),                # (C, 1)
    )


# --------------------------- pure-JAX reference (f32, PyTorch semantics) --------

def aff_ref(x_nchw, res_nchw, raw, eps=1e-5):
    def conv1x1(t, w, b):                      # w: (O, I)
        return jnp.einsum("nihw,oi->nohw", t, w) + b[None, :, None, None]

    def bn(t, stats):
        gamma, beta, mean, var = stats
        s = gamma / jnp.sqrt(var + eps)
        return (t - mean[None, :, None, None]) * s[None, :, None, None] \
            + beta[None, :, None, None]

    xa = x_nchw + res_nchw
    xl = conv1x1(xa, raw["l_w1"], raw["l_b1"])
    xl = jnp.maximum(bn(xl, raw["l_bn1"]), 0.0)
    xl = bn(conv1x1(xl, raw["l_w2"], raw["l_b2"]), raw["l_bn2"])

    xg = jnp.mean(xa, axis=(2, 3), keepdims=True)
    xg = jnp.maximum(conv1x1(xg, raw["g_w1"], raw["g_b1"]), 0.0)
    xg = conv1x1(xg, raw["g_w2"], raw["g_b2"])

    z = xl + xg
    wei = 1.0 / (1.0 + jnp.exp(-z))
    return 2.0 * x_nchw * wei + 2.0 * res_nchw * (1.0 - wei)


# --------------------------- main ------------------------------------------------

if __name__ == "__main__":
    channels, r = 64, 4                      # AFF defaults (inter_channels = 16)
    N, H, W = 2, 16, 16

    key = jax.random.PRNGKey(0)
    kx, kr, kp = jax.random.split(key, 3)
    x = jax.random.normal(kx, (N, channels, H, W), jnp.float32)        # NCHW
    residual = jax.random.normal(kr, (N, channels, H, W), jnp.float32)

    raw = init_raw_params(kp, channels, r)
    params = fold_params(raw)

    out = jax.block_until_ready(aff_forward(x, residual, params))
    ref = jax.block_until_ready(aff_ref(x, residual, raw))

    # bf16 MXU inputs (f32 accumulation) + EUP approx reciprocal -> slightly looser
    # tolerance than the pure-f32 reference; also check the mean error is tiny.
    np.testing.assert_allclose(np.asarray(out), np.asarray(ref), rtol=5e-2, atol=5e-2)
    assert float(np.abs(np.asarray(out) - np.asarray(ref)).mean()) < 1e-2
    assert out.shape == (N, channels, H, W)

    print("KERNEL_OK")
</pallas_src>

<mosaic_0001>
module attributes {stable_mosaic.version = 11 : i64} {
  func.func @_aff_kernel(%arg0: i32, %arg1: memref<2x64x256xf32, #tpu.memory_space<vmem>>, %arg2: memref<2x64x256xf32, #tpu.memory_space<vmem>>, %arg3: memref<32x64xbf16, #tpu.memory_space<vmem>>, %arg4: memref<32x1xf32, #tpu.memory_space<vmem>>, %arg5: memref<64x32xbf16, #tpu.memory_space<vmem>>, %arg6: memref<64x1xf32, #tpu.memory_space<vmem>>, %arg7: memref<2x64x256xf32, #tpu.memory_space<vmem>>) attributes {dimension_semantics = [#tpu.dimension_semantics<arbitrary>], iteration_bounds = array<i64: 1>, scalar_prefetch = 0 : i64, scratch_operands = 0 : i64, tpu.core_type = #tpu.core_type<tc>, window_params = [{transform_indices = @transform_0, window_bounds = array<i64: 2, 64, 256>}, {transform_indices = @transform_1, window_bounds = array<i64: 2, 64, 256>}, {pipeline_mode = #tpu.pipeline_mode<synchronous>, transform_indices = @transform_2, window_bounds = array<i64: 32, 64>}, {pipeline_mode = #tpu.pipeline_mode<synchronous>, transform_indices = @transform_3, window_bounds = array<i64: 32, 1>}, {pipeline_mode = #tpu.pipeline_mode<synchronous>, transform_indices = @transform_4, window_bounds = array<i64: 64, 32>}, {pipeline_mode = #tpu.pipeline_mode<synchronous>, transform_indices = @transform_5, window_bounds = array<i64: 64, 1>}, {transform_indices = @transform_6, window_bounds = array<i64: 2, 64, 256>}]} {
    %c0 = arith.constant 0 : index
    %c0_0 = arith.constant 0 : index
    %0 = vector.load %arg3[%c0, %c0_0] : memref<32x64xbf16, #tpu.memory_space<vmem>>, vector<32x64xbf16>
    %c0_1 = arith.constant 0 : index
    %c0_2 = arith.constant 0 : index
    %1 = vector.load %arg4[%c0_1, %c0_2] : memref<32x1xf32, #tpu.memory_space<vmem>>, vector<32x1xf32>
    %c0_3 = arith.constant 0 : index
    %c0_4 = arith.constant 0 : index
    %2 = vector.load %arg5[%c0_3, %c0_4] : memref<64x32xbf16, #tpu.memory_space<vmem>>, vector<64x32xbf16>
    %c0_5 = arith.constant 0 : index
    %c0_6 = arith.constant 0 : index
    %3 = vector.load %arg6[%c0_5, %c0_6] : memref<64x1xf32, #tpu.memory_space<vmem>>, vector<64x1xf32>
    %c0_7 = arith.constant 0 : index
    %c0_8 = arith.constant 0 : index
    %c0_9 = arith.constant 0 : index
    %4 = vector.load %arg1[%c0_7, %c0_8, %c0_9] : memref<2x64x256xf32, #tpu.memory_space<vmem>>, vector<1x64x256xf32>
    %5 = vector.shape_cast %4 : vector<1x64x256xf32> to vector<64x256xf32>
    %c0_10 = arith.constant 0 : index
    %c0_11 = arith.constant 0 : index
    %c0_12 = arith.constant 0 : index
    %6 = vector.load %arg2[%c0_10, %c0_11, %c0_12] : memref<2x64x256xf32, #tpu.memory_space<vmem>>, vector<1x64x256xf32>
    %7 = vector.shape_cast %6 : vector<1x64x256xf32> to vector<64x256xf32>
    %8 = arith.addf %5, %7 : vector<64x256xf32>
    %9 = arith.truncf %8 : vector<64x256xf32> to vector<64x256xbf16>
    %cst = arith.constant dense<0.000000e+00> : vector<32x256xf32>
    %10 = tpu.matmul %0, %9, %cst {dimension_numbers = #tpu.dot_dimension_numbers<[1], [0], [0], [1], [0, 0, 1, 1], [], []>} : vector<32x64xbf16>, vector<64x256xbf16>, vector<32x256xf32> -> vector<32x256xf32>
    %11 = vector.broadcast %1 : vector<32x1xf32> to vector<32x256xf32>
    %12 = arith.addf %10, %11 : vector<32x256xf32>
    %13 = vector.extract_strided_slice %12 {offsets = [0, 0], sizes = [16, 256], strides = [1, 1]} : vector<32x256xf32> to vector<16x256xf32>
    %cst_13 = arith.constant 0.000000e+00 : f32
    %14 = vector.broadcast %cst_13 : f32 to vector<16x256xf32>
    %15 = arith.maximumf %13, %14 : vector<16x256xf32>
    %16 = vector.extract_strided_slice %12 {offsets = [16, 0], sizes = [16, 256], strides = [1, 1]} : vector<32x256xf32> to vector<16x256xf32>
    %cst_14 = arith.constant dense<0.000000e+00> : vector<16xf32>
    %17 = vector.multi_reduction <add>, %16, %cst_14 [1] : vector<16x256xf32> to vector<16xf32>
    %18 = vector.shape_cast %17 : vector<16xf32> to vector<16x1xf32>
    %cst_15 = arith.constant 3.906250e-03 : f32
    %19 = vector.broadcast %cst_15 : f32 to vector<16x1xf32>
    %20 = arith.mulf %18, %19 : vector<16x1xf32>
    %cst_16 = arith.constant 0.000000e+00 : f32
    %21 = vector.broadcast %cst_16 : f32 to vector<16x1xf32>
    %22 = arith.maximumf %20, %21 : vector<16x1xf32>
    %23 = vector.shape_cast %22 : vector<16x1xf32> to vector<16x1xf32>
    %24 = vector.broadcast %23 : vector<16x1xf32> to vector<16x256xf32>
    %25 = tpu.concatenate %15, %24 in 0 : vector<16x256xf32>, vector<16x256xf32> -> vector<32x256xf32>
    %26 = arith.truncf %25 : vector<32x256xf32> to vector<32x256xbf16>
    %cst_17 = arith.constant dense<0.000000e+00> : vector<64x256xf32>
    %27 = tpu.matmul %2, %26, %cst_17 {dimension_numbers = #tpu.dot_dimension_numbers<[1], [0], [0], [1], [0, 0, 1, 1], [], []>} : vector<64x32xbf16>, vector<32x256xbf16>, vector<64x256xf32> -> vector<64x256xf32>
    %28 = vector.broadcast %3 : vector<64x1xf32> to vector<64x256xf32>
    %29 = arith.addf %27, %28 : vector<64x256xf32>
    %cst_18 = arith.constant 0.000000e+00 : f32
    %30 = vector.broadcast %cst_18 : f32 to vector<64x256xf32>
    %31 = arith.subf %30, %29 : vector<64x256xf32>
    %32 = math.exp %31 : vector<64x256xf32>
    %cst_19 = arith.constant 1.000000e+00 : f32
    %33 = vector.broadcast %cst_19 : f32 to vector<64x256xf32>
    %34 = arith.addf %33, %32 : vector<64x256xf32>
    %35 = tpu.reciprocal %34 {approx = true} : vector<64x256xf32> -> vector<64x256xf32>
    %36 = arith.subf %5, %7 : vector<64x256xf32>
    %37 = arith.mulf %35, %36 : vector<64x256xf32>
    %38 = arith.addf %7, %37 : vector<64x256xf32>
    %cst_20 = arith.constant 2.000000e+00 : f32
    %39 = vector.broadcast %cst_20 : f32 to vector<64x256xf32>
    %40 = arith.mulf %39, %38 : vector<64x256xf32>
    %c0_21 = arith.constant 0 : index
    %c0_22 = arith.constant 0 : index
    %c0_23 = arith.constant 0 : index
    %41 = vector.load %arg7[%c0_21, %c0_22, %c0_23] : memref<2x64x256xf32, #tpu.memory_space<vmem>>, vector<1x64x256xf32>
    %42 = vector.shape_cast %41 : vector<1x64x256xf32> to vector<64x256xf32>
    %43 = vector.shape_cast %40 : vector<64x256xf32> to vector<1x64x256xf32>
    tpu.vector_store %arg7[%c0_21, %c0_22, %c0_23], %43 {strides = array<i32>} : memref<2x64x256xf32, #tpu.memory_space<vmem>>, vector<1x64x256xf32>,
    %c1 = arith.constant 1 : index
    %c0_24 = arith.constant 0 : index
    %c0_25 = arith.constant 0 : index
    %44 = vector.load %arg1[%c1, %c0_24, %c0_25] : memref<2x64x256xf32, #tpu.memory_space<vmem>>, vector<1x64x256xf32>
    %45 = vector.shape_cast %44 : vector<1x64x256xf32> to vector<64x256xf32>
    %c1_26 = arith.constant 1 : index
    %c0_27 = arith.constant 0 : index
    %c0_28 = arith.constant 0 : index
    %46 = vector.load %arg2[%c1_26, %c0_27, %c0_28] : memref<2x64x256xf32, #tpu.memory_space<vmem>>, vector<1x64x256xf32>
    %47 = vector.shape_cast %46 : vector<1x64x256xf32> to vector<64x256xf32>
    %48 = arith.addf %45, %47 : vector<64x256xf32>
    %49 = arith.truncf %48 : vector<64x256xf32> to vector<64x256xbf16>
    %cst_29 = arith.constant dense<0.000000e+00> : vector<32x256xf32>
    %50 = tpu.matmul %0, %49, %cst_29 {dimension_numbers = #tpu.dot_dimension_numbers<[1], [0], [0], [1], [0, 0, 1, 1], [], []>} : vector<32x64xbf16>, vector<64x256xbf16>, vector<32x256xf32> -> vector<32x256xf32>
    %51 = vector.broadcast %1 : vector<32x1xf32> to vector<32x256xf32>
    %52 = arith.addf %50, %51 : vector<32x256xf32>
    %53 = vector.extract_strided_slice %52 {offsets = [0, 0], sizes = [16, 256], strides = [1, 1]} : vector<32x256xf32> to vector<16x256xf32>
    %cst_30 = arith.constant 0.000000e+00 : f32
    %54 = vector.broadcast %cst_30 : f32 to vector<16x256xf32>
    %55 = arith.maximumf %53, %54 : vector<16x256xf32>
    %56 = vector.extract_strided_slice %52 {offsets = [16, 0], sizes = [16, 256], strides = [1, 1]} : vector<32x256xf32> to vector<16x256xf32>
    %cst_31 = arith.constant dense<0.000000e+00> : vector<16xf32>
    %57 = vector.multi_reduction <add>, %56, %cst_31 [1] : vector<16x256xf32> to vector<16xf32>
    %58 = vector.shape_cast %57 : vector<16xf32> to vector<16x1xf32>
    %cst_32 = arith.constant 3.906250e-03 : f32
    %59 = vector.broadcast %cst_32 : f32 to vector<16x1xf32>
    %60 = arith.mulf %58, %59 : vector<16x1xf32>
    %cst_33 = arith.constant 0.000000e+00 : f32
    %61 = vector.broadcast %cst_33 : f32 to vector<16x1xf32>
    %62 = arith.maximumf %60, %61 : vector<16x1xf32>
    %63 = vector.shape_cast %62 : vector<16x1xf32> to vector<16x1xf32>
    %64 = vector.broadcast %63 : vector<16x1xf32> to vector<16x256xf32>
    %65 = tpu.concatenate %55, %64 in 0 : vector<16x256xf32>, vector<16x256xf32> -> vector<32x256xf32>
    %66 = arith.truncf %65 : vector<32x256xf32> to vector<32x256xbf16>
    %cst_34 = arith.constant dense<0.000000e+00> : vector<64x256xf32>
    %67 = tpu.matmul %2, %66, %cst_34 {dimension_numbers = #tpu.dot_dimension_numbers<[1], [0], [0], [1], [0, 0, 1, 1], [], []>} : vector<64x32xbf16>, vector<32x256xbf16>, vector<64x256xf32> -> vector<64x256xf32>
    %68 = vector.broadcast %3 : vector<64x1xf32> to vector<64x256xf32>
    %69 = arith.addf %67, %68 : vector<64x256xf32>
    %cst_35 = arith.constant 0.000000e+00 : f32
    %70 = vector.broadcast %cst_35 : f32 to vector<64x256xf32>
    %71 = arith.subf %70, %69 : vector<64x256xf32>
    %72 = math.exp %71 : vector<64x256xf32>
    %cst_36 = arith.constant 1.000000e+00 : f32
    %73 = vector.broadcast %cst_36 : f32 to vector<64x256xf32>
    %74 = arith.addf %73, %72 : vector<64x256xf32>
    %75 = tpu.reciprocal %74 {approx = true} : vector<64x256xf32> -> vector<64x256xf32>
    %76 = arith.subf %45, %47 : vector<64x256xf32>
    %77 = arith.mulf %75, %76 : vector<64x256xf32>
    %78 = arith.addf %47, %77 : vector<64x256xf32>
    %cst_37 = arith.constant 2.000000e+00 : f32
    %79 = vector.broadcast %cst_37 : f32 to vector<64x256xf32>
    %80 = arith.mulf %79, %78 : vector<64x256xf32>
    %c1_38 = arith.constant 1 : index
    %c0_39 = arith.constant 0 : index
    %c0_40 = arith.constant 0 : index
    %81 = vector.load %arg7[%c1_38, %c0_39, %c0_40] : memref<2x64x256xf32, #tpu.memory_space<vmem>>, vector<1x64x256xf32>
    %82 = vector.shape_cast %81 : vector<1x64x256xf32> to vector<64x256xf32>
    %83 = vector.shape_cast %80 : vector<64x256xf32> to vector<1x64x256xf32>
    tpu.vector_store %arg7[%c1_38, %c0_39, %c0_40], %83 {strides = array<i32>} : memref<2x64x256xf32, #tpu.memory_space<vmem>>, vector<1x64x256xf32>,
    return
  }
  func.func @transform_0(%arg0: i32) -> (i32, i32, i32) {
    %c0_i32 = arith.constant 0 : i32
    %c0_i32_0 = arith.constant 0 : i32
    %c0_i32_1 = arith.constant 0 : i32
    return %arg0, %c0_i32, %c0_i32_0 : i32, i32, i32
  }
  func.func @transform_1(%arg0: i32) -> (i32, i32, i32) {
    %c0_i32 = arith.constant 0 : i32
    %c0_i32_0 = arith.constant 0 : i32
    %c0_i32_1 = arith.constant 0 : i32
    return %arg0, %c0_i32, %c0_i32_0 : i32, i32, i32
  }
  func.func @transform_2(%arg0: i32) -> (i32, i32) {
    %c0_i32 = arith.constant 0 : i32
    %c0_i32_0 = arith.constant 0 : i32
    %c0_i32_1 = arith.constant 0 : i32
    return %c0_i32, %c0_i32_0 : i32, i32
  }
  func.func @transform_3(%arg0: i32) -> (i32, i32) {
    %c0_i32 = arith.constant 0 : i32
    %c0_i32_0 = arith.constant 0 : i32
    %c0_i32_1 = arith.constant 0 : i32
    return %c0_i32, %c0_i32_0 : i32, i32
  }
  func.func @transform_4(%arg0: i32) -> (i32, i32) {
    %c0_i32 = arith.constant 0 : i32
    %c0_i32_0 = arith.constant 0 : i32
    %c0_i32_1 = arith.constant 0 : i32
    return %c0_i32, %c0_i32_0 : i32, i32
  }
  func.func @transform_5(%arg0: i32) -> (i32, i32) {
    %c0_i32 = arith.constant 0 : i32
    %c0_i32_0 = arith.constant 0 : i32
    %c0_i32_1 = arith.constant 0 : i32
    return %c0_i32, %c0_i32_0 : i32, i32
  }
  func.func @transform_6(%arg0: i32) -> (i32, i32, i32) {
    %c0_i32 = arith.constant 0 : i32
    %c0_i32_0 = arith.constant 0 : i32
    %c0_i32_1 = arith.constant 0 : i32
    return %arg0, %c0_i32, %c0_i32_0 : i32, i32, i32
  }
}

</mosaic_0001>

<llo_original>
// kernel: tpu_custom_call.1
$region0: #{tpu_custom_call.1}
  #allocation0 [shape = 'u32[]', space=smem, size = 0x4, offset = 0x4, fixed_abs, tag = 'smem constant byte address 0x4 - core index']
  #allocation1 [shape = 'u32[144,128]{1,0:T(1,128)}', space=vmem, size = 0x12000, scoped, tag = 'internal scratch']
  %s0 = inlined_call_operand.hbm [shape: f32[2,64,256], index: 0, kind: input, shape index: {}]
  %s1 = inlined_call_operand.hbm [shape: f32[2,64,256], index: 1, kind: input, shape index: {}]
  %s2 = inlined_call_operand.vmem [shape: bf16[32,64], index: 2, kind: input, shape index: {}]
  %s3 = inlined_call_operand.vmem [shape: f32[32,1], index: 3, kind: input, shape index: {}]
  %s4 = inlined_call_operand.vmem [shape: bf16[64,32], index: 4, kind: input, shape index: {}]
  %s5 = inlined_call_operand.vmem [shape: f32[64,1], index: 5, kind: input, shape index: {}]
  %s6 = inlined_call_operand.hbm [shape: f32[2,64,256], index: 6, kind: output, shape index: {}]
  %s7 = sld [smem:[#allocation0]]
  $region42: #{tpu_custom_call.1} parent=0
    _
  %s9 = ssub.s32 1, %s7
  %s10 = scalar_select 0, %s9, %s7
  $region1: #{tpu_custom_call.1} parent=0
    #allocation2 [shape = 'u8[131072]{0}', space=vmem, size = 0x20000, scoped, tag = 'input window, operand 0, single buffered']
    #allocation3 [shape = 's32[1]{0}', space=sflag, size = 0x4, scoped, tag = 'scoped memory for tpu_custom_call.1']
    #allocation4 [shape = 's32[1]{0}', space=sflag, size = 0x4, scoped, tag = 'scoped memory for tpu_custom_call.1']
    #allocation5 [shape = 'u8[131072]{0}', space=vmem, size = 0x20000, scoped, tag = 'input window, operand 1, single buffered']
    #allocation6 [shape = 's32[1]{0}', space=sflag, size = 0x4, scoped, tag = 'scoped memory for tpu_custom_call.1']
    #allocation7 [shape = 'u8[131072]{0}', space=vmem, size = 0x20000, scoped, tag = 'output window, operand 0, single buffered']
    %11 = vsyncpa [#allocation3], 0
    %12 = vsyncpa [#allocation6], 0
    %13 = vsyncpa [#allocation4], 0
    // Predicated region
    $region2: #{tpu_custom_call.1} parent=1 // pred_check
      _
    $region3: #{tpu_custom_call.1} parent=1 // pred_check_branch
      %15 = sbr.rel (0) target = $region5
    $region4: #{tpu_custom_call.1} parent=1 // pred_region
      %s17 = ssub.s32 4096, 4096
      %18 = vsyncadd [#allocation3], %s17
      %s19 = sshll.u32 [#allocation2], 4
      %s20 = int_to_ptr.vmem [resolvable:$true] %s19
      %25 = dma.hbm_to_vmem [thread:$0]  %s0, 4096, %s20, [#allocation3], 256, 256, 16
    $region5: #{tpu_custom_call.1} parent=1 // pred_fallthru
      _
    // Predicated region
    $region6: #{tpu_custom_call.1} parent=1 // pred_check
      _
    $region7: #{tpu_custom_call.1} parent=1 // pred_check_branch
      %27 = sbr.rel (0) target = $region9
    $region8: #{tpu_custom_call.1} parent=1 // pred_region
      %s29 = ssub.s32 4096, 4096
      %30 = vsyncadd [#allocation6], %s29
      %s31 = sshll.u32 [#allocation5], 4
      %s32 = int_to_ptr.vmem [resolvable:$true] %s31
      %37 = dma.hbm_to_vmem [thread:$0]  %s1, 4096, %s32, [#allocation6], 256, 256, 16
    $region9: #{tpu_custom_call.1} parent=1 // pred_fallthru
      _
    // Predicated region
    $region10: #{tpu_custom_call.1} parent=1 // pred_check
      _
    $region11: #{tpu_custom_call.1} parent=1 // pred_check_branch
      %39 = sbr.rel (0) target = $region13
    $region12: #{tpu_custom_call.1} parent=1 // pred_region
      _
    $region13: #{tpu_custom_call.1} parent=1 // pred_fallthru
      _
    // Predicated region
    $region14: #{tpu_custom_call.1} parent=1 // pred_check
      _
    $region15: #{tpu_custom_call.1} parent=1 // pred_check_branch
      %41 = sbr.rel (0) target = $region17
    $region16: #{tpu_custom_call.1} parent=1 // pred_region
      _
    $region17: #{tpu_custom_call.1} parent=1 // pred_fallthru
      _
    // Predicated region
    $region18: #{tpu_custom_call.1} parent=1 // pred_check
      _
    $region19: #{tpu_custom_call.1} parent=1 // pred_check_branch
      %43 = sbr.rel (0) target = $region21
    $region20: #{tpu_custom_call.1} parent=1 // pred_region
      _
    $region21: #{tpu_custom_call.1} parent=1 // pred_fallthru
      _
    // Predicated region
    $region22: #{tpu_custom_call.1} parent=1 // pred_check
      _
    $region23: #{tpu_custom_call.1} parent=1 // pred_check_branch
      %45 = sbr.rel (0) target = $region25
    $region24: #{tpu_custom_call.1} parent=1 // pred_region
      _
    $region25: #{tpu_custom_call.1} parent=1 // pred_fallthru
      _
    // Predicated region
    $region26: #{tpu_custom_call.1} parent=1 // pred_check
      _
    $region27: #{tpu_custom_call.1} parent=1 // pred_check_branch
      %47 = sbr.rel (0) target = $region29
    $region28: #{tpu_custom_call.1} parent=1 // pred_region
      %48 = dma.done [#allocation3], 4096
    $region29: #{tpu_custom_call.1} parent=1 // pred_fallthru
      _
    // Predicated region
    $region30: #{tpu_custom_call.1} parent=1 // pred_check
      _
    $region31: #{tpu_custom_call.1} parent=1 // pred_check_branch
      %50 = sbr.rel (0) target = $region33
    $region32: #{tpu_custom_call.1} parent=1 // pred_region
      %51 = dma.done [#allocation6], 4096
    $region33: #{tpu_custom_call.1} parent=1 // pred_fallthru
      _
    %v53 = vld [vmem:[%s2] sm:$0xf]
    %v54 = vld [vmem:[%s2 + $0x4] sm:$0xf]
    %v55 = vld [vmem:[%s2 + $0x8] sm:$0xf]
    %v56 = vld [vmem:[%s2 + $0xc] sm:$0xf]
    %v57 = vld [vmem:[%s3] sm:$0xff]
    %v58 = vld [vmem:[%s3 + $0x8] sm:$0xff]
    %v59 = vld [vmem:[%s3 + $0x10] sm:$0xff]
    %v60 = vld [vmem:[%s3 + $0x18] sm:$0xff]
    %v61 = vld [vmem:[%s4] sm:$0xf]
    %v62 = vld [vmem:[%s4 + $0x4] sm:$0xf]
    %v63 = vld [vmem:[%s4 + $0x8] sm:$0xf]
    %v64 = vld [vmem:[%s4 + $0xc] sm:$0xf]
    %v65 = vld [vmem:[%s4 + $0x10] sm:$0xf]
    %v66 = vld [vmem:[%s4 + $0x14] sm:$0xf]
    %v67 = vld [vmem:[%s4 + $0x18] sm:$0xf]
    %v68 = vld [vmem:[%s4 + $0x1c] sm:$0xf]
    %v69 = vld [vmem:[%s5] sm:$0xff]
    %v70 = vld [vmem:[%s5 + $0x8] sm:$0xff]
    %v71 = vld [vmem:[%s5 + $0x10] sm:$0xff]
    %v72 = vld [vmem:[%s5 + $0x18] sm:$0xff]
    %v73 = vld [vmem:[%s5 + $0x20] sm:$0xff]
    %v74 = vld [vmem:[%s5 + $0x28] sm:$0xff]
    %v75 = vld [vmem:[%s5 + $0x30] sm:$0xff]
    %v76 = vld [vmem:[%s5 + $0x38] sm:$0xff]
    %v77 = vld [vmem:[#allocation2] sm:$0xff]
    %v78 = vld [vmem:[#allocation2 + $0x8] sm:$0xff]
    %v79 = vld [vmem:[#allocation2 + $0x10] sm:$0xff]
    %v80 = vld [vmem:[#allocation2 + $0x18] sm:$0xff]
    %v81 = vld [vmem:[#allocation2 + $0x20] sm:$0xff]
    %v82 = vld [vmem:[#allocation2 + $0x28] sm:$0xff]
    %v83 = vld [vmem:[#allocation2 + $0x30] sm:$0xff]
    %v84 = vld [vmem:[#allocation2 + $0x38] sm:$0xff]
    %v85 = vld [vmem:[#allocation2 + $0x40] sm:$0xff]
    %v86 = vld [vmem:[#allocation2 + $0x48] sm:$0xff]
    %v87 = vld [vmem:[#allocation2 + $0x50] sm:$0xff]
    %v88 = vld [vmem:[#allocation2 + $0x58] sm:$0xff]
    %v89 = vld [vmem:[#allocation2 + $0x60] sm:$0xff]
    %v90 = vld [vmem:[#allocation2 + $0x68] sm:$0xff]
    %v91 = vld [vmem:[#allocation2 + $0x70] sm:$0xff]
    %v92 = vld [vmem:[#allocation2 + $0x78] sm:$0xff]
    %v93 = vld [vmem:[#allocation5] sm:$0xff]
    %v94 = vld [vmem:[#allocation5 + $0x8] sm:$0xff]
    %v95 = vld [vmem:[#allocation5 + $0x10] sm:$0xff]
    %v96 = vld [vmem:[#allocation5 + $0x18] sm:$0xff]
    %v97 = vld [vmem:[#allocation5 + $0x20] sm:$0xff]
    %v98 = vld [vmem:[#allocation5 + $0x28] sm:$0xff]
    %v99 = vld [vmem:[#allocation5 + $0x30] sm:$0xff]
    %v100 = vld [vmem:[#allocation5 + $0x38] sm:$0xff]
    %v101 = vld [vmem:[#allocation5 + $0x40] sm:$0xff]
    %v102 = vld [vmem:[#allocation5 + $0x48] sm:$0xff]
    %v103 = vld [vmem:[#allocation5 + $0x50] sm:$0xff]
    %v104 = vld [vmem:[#allocation5 + $0x58] sm:$0xff]
    %v105 = vld [vmem:[#allocation5 + $0x60] sm:$0xff]
    %v106 = vld [vmem:[#allocation5 + $0x68] sm:$0xff]
    %v107 = vld [vmem:[#allocation5 + $0x70] sm:$0xff]
    %v108 = vld [vmem:[#allocation5 + $0x78] sm:$0xff]
    %v109 = vadd.f32 %v77, %v93
    %v110 = vadd.f32 %v78, %v94
    %v111 = vadd.f32 %v79, %v95
    %v112 = vadd.f32 %v80, %v96
    %v113 = vadd.f32 %v81, %v97
    %v114 = vadd.f32 %v82, %v98
    %v115 = vadd.f32 %v83, %v99
    %v116 = vadd.f32 %v84, %v100
    %v117 = vadd.f32 %v85, %v101
    %v118 = vadd.f32 %v86, %v102
    %v119 = vadd.f32 %v87, %v103
    %v120 = vadd.f32 %v88, %v104
    %v121 = vadd.f32 %v89, %v105
    %v122 = vadd.f32 %v90, %v106
    %v123 = vadd.f32 %v91, %v107
    %v124 = vadd.f32 %v92, %v108
    %v125 = vpack.c.bf16 %v111, %v109
    %v126 = vpack.c.bf16 %v112, %v110
    %v127 = vpack.c.bf16 %v115, %v113
    %v128 = vpack.c.bf16 %v116, %v114
    %v129 = vpack.c.bf16 %v119, %v117
    %v130 = vpack.c.bf16 %v120, %v118
    %v131 = vpack.c.bf16 %v123, %v121
    %v132 = vpack.c.bf16 %v124, %v122
    %134 = vset.pattern.permute.xlu0 0
    %135 = vperm.xlu0 %134, %v57
    %v136 = vpop.permute.xlu0 %135
    %139 = vset.pattern.permute.xlu0 0
    %140 = vperm.xlu0 %139, %v58
    %v141 = vpop.permute.xlu0 %140
    %144 = vset.pattern.permute.xlu0 0
    %145 = vperm.xlu0 %144, %v59
    %v146 = vpop.permute.xlu0 %145
    %149 = vset.pattern.permute.xlu0 0
    %150 = vperm.xlu0 %149, %v60
    %v151 = vpop.permute.xlu0 %150
    %v157 = vunpack.c.l.b16 %v53
    %v158 = vunpack.c.l.b16 %v54
    %v159 = vunpack.c.l.b16 %v55
    %v160 = vunpack.c.l.b16 %v56
    %v161 = vpack.c.b16 %v158, %v157
    %v162 = vpack.c.b16 %v160, %v159
    %vm163 = vcmask 523264
    %v165 = vsel %vm163, %v161, 0
    %v168 = vsel %vm163, %v162, 0
    %170 = vmatprep.subr.bf16.mxu0 %v126
    %171 = vmatpush1.bf16.msra.mxu0 %v125
    %172 = vmatprep.subr.bf16.mxu0 %v128
    %173 = vmatpush1.bf16.msra.mxu0 %v127
    %174 = vmatprep.subr.bf16.mxu0 %v130
    %175 = vmatpush1.bf16.msra.mxu0 %v129
    %176 = vmatprep.subr.bf16.mxu0 %v132
    %177 = vmatpush1.bf16.msra.mxu0 %v131
    %178 = vmatprep.subr.bf16.mxu0 0
    %179 = vmatpush1.bf16.msra.mxu0 0
    %180 = vmatprep.subr.bf16.mxu0 0
    %181 = vmatpush1.bf16.msra.mxu0 0
    %182 = vmatprep.subr.bf16.mxu0 0
    %183 = vmatpush1.bf16.msra.mxu0 0
    %184 = vmatprep.subr.bf16.mxu0 0
    %185 = vmatpush1.bf16.msra.mxu0 0
    %186 = vmatprep.subr.bf16.mxu0 0
    %187 = vmatpush1.bf16.msra.mxu0 0
    %188 = vmatprep.subr.bf16.mxu0 0
    %189 = vmatpush1.bf16.msra.mxu0 0
    %190 = vmatprep.subr.bf16.mxu0 0
    %191 = vmatpush1.bf16.msra.mxu0 0
    %192 = vmatprep.subr.bf16.mxu0 0
    %193 = vmatpush1.bf16.msra.mxu0 0
    %194 = vmatprep.subr.bf16.mxu0 0
    %195 = vmatpush1.bf16.msra.mxu0 0
    %196 = vmatprep.subr.bf16.mxu0 0
    %197 = vmatpush1.bf16.msra.mxu0 0
    %198 = vmatprep.subr.bf16.mxu0 0
    %199 = vmatpush1.bf16.msra.mxu0 0
    %200 = vmatprep.subr.bf16.mxu0 0
    %201 = vmatpush1.bf16.msra.mxu0 0
    %202 = vmatprep.mubr.bf16.mxu0 0
    %203 = vmatmul.mubr.bf16.gmra.mrb[0].mxu0 %v165
    %v204 = vpop.f32.mrb[0].mxu0
    %v205 = vadd.f32 %v136, %v204
    %v206 = vpop.f32.mrb[0].mxu0
    %v207 = vadd.f32 %v136, %v206
    %v208 = vpop.f32.mrb[0].mxu0
    %v209 = vadd.f32 %v141, %v208
    %v210 = vpop.f32.mrb[0].mxu0
    %v211 = vadd.f32 %v141, %v210
    %212 = vmatprep.mubr.bf16.mxu0 0
    %213 = vmatmul.mubr.bf16.gmra.mrb[0].mxu0 %v168
    %v214 = vpop.f32.mrb[0].mxu0
    %v215 = vadd.f32 %v146, %v214
    %v216 = vpop.f32.mrb[0].mxu0
    %v217 = vadd.f32 %v146, %v216
    %v218 = vpop.f32.mrb[0].mxu0
    %v219 = vadd.f32 %v151, %v218
    %v220 = vpop.f32.mrb[0].mxu0
    %v221 = vadd.f32 %v151, %v220
    %222 = vdwg.mxu0
    %v223 = vmax.f32 %v205, 0.0
    %v224 = vmax.f32 %v207, 0.0
    %v225 = vmax.f32 %v209, 0.0
    %v226 = vmax.f32 %v211, 0.0
    %v227 = vadd.f32 %v215, %v217
    %228 = vadd.xlane.f32.xlu0 %v227
    %v229 = vpop.xlane.xlu0 %228
    %v230 = vadd.f32 %v219, %v221
    %231 = vadd.xlane.f32.xlu0 %v230
    %v232 = vpop.xlane.xlu0 %231
    %v233 = vmul.f32 %v229, 0.00390625
    %v234 = vmul.f32 %v232, 0.00390625
    %v235 = vmax.f32 %v233, 0.0
    %v236 = vmax.f32 %v234, 0.0
    %v237 = vpack.c.bf16 %v225, %v223
    %v238 = vpack.c.bf16 %v226, %v224
    %v239 = vpack.c.bf16 %v236, %v235
    %241 = vset.pattern.permute.xlu0 0
    %242 = vperm.xlu0 %241, %v69
    %v243 = vpop.permute.xlu0 %242
    %246 = vset.pattern.permute.xlu0 0
    %247 = vperm.xlu0 %246, %v70
    %v248 = vpop.permute.xlu0 %247
    %251 = vset.pattern.permute.xlu0 0
    %252 = vperm.xlu0 %251, %v71
    %v253 = vpop.permute.xlu0 %252
    %256 = vset.pattern.permute.xlu0 0
    %257 = vperm.xlu0 %256, %v72
    %v258 = vpop.permute.xlu0 %257
    %261 = vset.pattern.permute.xlu0 0
    %262 = vperm.xlu0 %261, %v73
    %v263 = vpop.permute.xlu0 %262
    %266 = vset.pattern.permute.xlu0 0
    %267 = vperm.xlu0 %266, %v74
    %v268 = vpop.permute.xlu0 %267
    %271 = vset.pattern.permute.xlu0 0
    %272 = vperm.xlu0 %271, %v75
    %v273 = vpop.permute.xlu0 %272
    %276 = vset.pattern.permute.xlu0 0
    %277 = vperm.xlu0 %276, %v76
    %v278 = vpop.permute.xlu0 %277
    %v288 = vunpack.c.l.b16 %v61
    %v289 = vunpack.c.l.b16 %v62
    %v290 = vunpack.c.l.b16 %v63
    %v291 = vunpack.c.l.b16 %v64
    %v292 = vunpack.c.l.b16 %v65
    %v293 = vunpack.c.l.b16 %v66
    %v294 = vunpack.c.l.b16 %v67
    %v295 = vunpack.c.l.b16 %v68
    %v296 = vpack.c.b16 %v289, %v288
    %v297 = vpack.c.b16 %v291, %v290
    %v298 = vpack.c.b16 %v293, %v292
    %v299 = vpack.c.b16 %v295, %v294
    %vm300 = vcmask 261120
    %v302 = vsel %vm300, %v296, 0
    %v305 = vsel %vm300, %v297, 0
    %v308 = vsel %vm300, %v298, 0
    %v311 = vsel %vm300, %v299, 0
    %313 = vmatprep.subr.bf16.mxu0 %v238
    %314 = vmatpush1.bf16.msra.mxu0 %v237
    %315 = vmatprep.subr.bf16.mxu0 %v239
    %316 = vmatpush1.bf16.msra.mxu0 %v239
    %317 = vmatprep.subr.bf16.mxu0 0
    %318 = vmatpush1.bf16.msra.mxu0 0
    %319 = vmatprep.subr.bf16.mxu0 0
    %320 = vmatpush1.bf16.msra.mxu0 0
    %321 = vmatprep.subr.bf16.mxu0 0
    %322 = vmatpush1.bf16.msra.mxu0 0
    %323 = vmatprep.subr.bf16.mxu0 0
    %324 = vmatpush1.bf16.msra.mxu0 0
    %325 = vmatprep.subr.bf16.mxu0 0
    %326 = vmatpush1.bf16.msra.mxu0 0
    %327 = vmatprep.subr.bf16.mxu0 0
    %328 = vmatpush1.bf16.msra.mxu0 0
    %329 = vmatprep.subr.bf16.mxu0 0
    %330 = vmatpush1.bf16.msra.mxu0 0
    %331 = vmatprep.subr.bf16.mxu0 0
    %332 = vmatpush1.bf16.msra.mxu0 0
    %333 = vmatprep.subr.bf16.mxu0 0
    %334 = vmatpush1.bf16.msra.mxu0 0
    %335 = vmatprep.subr.bf16.mxu0 0
    %336 = vmatpush1.bf16.msra.mxu0 0
    %337 = vmatprep.subr.bf16.mxu0 0
    %338 = vmatpush1.bf16.msra.mxu0 0
    %339 = vmatprep.subr.bf16.mxu0 0
    %340 = vmatpush1.bf16.msra.mxu0 0
    %341 = vmatprep.subr.bf16.mxu0 0
    %342 = vmatpush1.bf16.msra.mxu0 0
    %343 = vmatprep.subr.bf16.mxu0 0
    %344 = vmatpush1.bf16.msra.mxu0 0
    %345 = vmatprep.mubr.bf16.mxu0 0
    %346 = vmatmul.mubr.bf16.gmra.mrb[0].mxu0 %v302
    %v347 = vpop.f32.mrb[0].mxu0
    %v348 = vadd.f32 %v243, %v347
    %v349 = vpop.f32.mrb[0].mxu0
    %v350 = vadd.f32 %v243, %v349
    %v351 = vpop.f32.mrb[0].mxu0
    %v352 = vadd.f32 %v248, %v351
    %v353 = vpop.f32.mrb[0].mxu0
    %v354 = vadd.f32 %v248, %v353
    %355 = vmatprep.mubr.bf16.mxu0 0
    %356 = vmatmul.mubr.bf16.gmra.mrb[0].mxu0 %v305
    %v357 = vpop.f32.mrb[0].mxu0
    %v358 = vadd.f32 %v253, %v357
    %v359 = vpop.f32.mrb[0].mxu0
    %v360 = vadd.f32 %v253, %v359
    %v361 = vpop.f32.mrb[0].mxu0
    %v362 = vadd.f32 %v258, %v361
    %v363 = vpop.f32.mrb[0].mxu0
    %v364 = vadd.f32 %v258, %v363
    %365 = vmatprep.mubr.bf16.mxu0 0
    %366 = vmatmul.mubr.bf16.gmra.mrb[0].mxu0 %v308
    %v367 = vpop.f32.mrb[0].mxu0
    %v368 = vadd.f32 %v263, %v367
    %v369 = vpop.f32.mrb[0].mxu0
    %v370 = vadd.f32 %v263, %v369
    %v371 = vpop.f32.mrb[0].mxu0
    %v372 = vadd.f32 %v268, %v371
    %v373 = vpop.f32.mrb[0].mxu0
    %v374 = vadd.f32 %v268, %v373
    %375 = vmatprep.mubr.bf16.mxu0 0
    %376 = vmatmul.mubr.bf16.gmra.mrb[0].mxu0 %v311
    %v377 = vpop.f32.mrb[0].mxu0
    %v378 = vadd.f32 %v273, %v377
    %v379 = vpop.f32.mrb[0].mxu0
    %v380 = vadd.f32 %v273, %v379
    %v381 = vpop.f32.mrb[0].mxu0
    %v382 = vadd.f32 %v278, %v381
    %v383 = vpop.f32.mrb[0].mxu0
    %v384 = vadd.f32 %v278, %v383
    %385 = vdwg.mxu0
    %v386 = vsub.f32 0.0, %v348
    %v387 = vsub.f32 0.0, %v350
    %v388 = vsub.f32 0.0, %v352
    %v389 = vsub.f32 0.0, %v354
    %v390 = vsub.f32 0.0, %v358
    %v391 = vsub.f32 0.0, %v360
    %v392 = vsub.f32 0.0, %v362
    %v393 = vsub.f32 0.0, %v364
    %v394 = vsub.f32 0.0, %v368
    %v395 = vsub.f32 0.0, %v370
    %v396 = vsub.f32 0.0, %v372
    %v397 = vsub.f32 0.0, %v374
    %v398 = vsub.f32 0.0, %v378
    %v399 = vsub.f32 0.0, %v380
    %v400 = vsub.f32 0.0, %v382
    %v401 = vsub.f32 0.0, %v384
    %v402 = vmul.f32 %v386, 1.442695
    %v403 = vpow.pop %v402
    %v404 = vmul.f32 %v387, 1.442695
    %v405 = vpow.pop %v404
    %v406 = vmul.f32 %v388, 1.442695
    %v407 = vpow.pop %v406
    %v408 = vmul.f32 %v389, 1.442695
    %v409 = vpow.pop %v408
    %v410 = vmul.f32 %v390, 1.442695
    %v411 = vpow.pop %v410
    %v412 = vmul.f32 %v391, 1.442695
    %v413 = vpow.pop %v412
    %v414 = vmul.f32 %v392, 1.442695
    %v415 = vpow.pop %v414
    %v416 = vmul.f32 %v393, 1.442695
    %v417 = vpow.pop %v416
    %v418 = vmul.f32 %v394, 1.442695
    %v419 = vpow.pop %v418
    %v420 = vmul.f32 %v395, 1.442695
    %v421 = vpow.pop %v420
    %v422 = vmul.f32 %v396, 1.442695
    %v423 = vpow.pop %v422
    %v424 = vmul.f32 %v397, 1.442695
    %v425 = vpow.pop %v424
    %v426 = vmul.f32 %v398, 1.442695
    %v427 = vpow.pop %v426
    %v428 = vmul.f32 %v399, 1.442695
    %v429 = vpow.pop %v428
    %v430 = vmul.f32 %v400, 1.442695
    %v431 = vpow.pop %v430
    %v432 = vmul.f32 %v401, 1.442695
    %v433 = vpow.pop %v432
    %v434 = vadd.f32 %v403, 1.0
    %v435 = vadd.f32 %v405, 1.0
    %v436 = vadd.f32 %v407, 1.0
    %v437 = vadd.f32 %v409, 1.0
    %v438 = vadd.f32 %v411, 1.0
    %v439 = vadd.f32 %v413, 1.0
    %v440 = vadd.f32 %v415, 1.0
    %v441 = vadd.f32 %v417, 1.0
    %v442 = vadd.f32 %v419, 1.0
    %v443 = vadd.f32 %v421, 1.0
    %v444 = vadd.f32 %v423, 1.0
    %v445 = vadd.f32 %v425, 1.0
    %v446 = vadd.f32 %v427, 1.0
    %v447 = vadd.f32 %v429, 1.0
    %v448 = vadd.f32 %v431, 1.0
    %v449 = vadd.f32 %v433, 1.0
    %v450 = vrcp.pop %v434
    %v451 = vrcp.pop %v435
    %v452 = vrcp.pop %v436
    %v453 = vrcp.pop %v437
    %v454 = vrcp.pop %v438
    %v455 = vrcp.pop %v439
    %v456 = vrcp.pop %v440
    %v457 = vrcp.pop %v441
    %v458 = vrcp.pop %v442
    %v459 = vrcp.pop %v443
    %v460 = vrcp.pop %v444
    %v461 = vrcp.pop %v445
    %v462 = vrcp.pop %v446
    %v463 = vrcp.pop %v447
    %v464 = vrcp.pop %v448
    %v465 = vrcp.pop %v449
    %v466 = vsub.f32 %v77, %v93
    %v467 = vsub.f32 %v78, %v94
    %v468 = vsub.f32 %v79, %v95
    %v469 = vsub.f32 %v80, %v96
    %v470 = vsub.f32 %v81, %v97
    %v471 = vsub.f32 %v82, %v98
    %v472 = vsub.f32 %v83, %v99
    %v473 = vsub.f32 %v84, %v100
    %v474 = vsub.f32 %v85, %v101
    %v475 = vsub.f32 %v86, %v102
    %v476 = vsub.f32 %v87, %v103
    %v477 = vsub.f32 %v88, %v104
    %v478 = vsub.f32 %v89, %v105
    %v479 = vsub.f32 %v90, %v106
    %v480 = vsub.f32 %v91, %v107
    %v481 = vsub.f32 %v92, %v108
    %v482 = vmul.f32 %v450, %v466
    %v483 = vmul.f32 %v451, %v467
    %v484 = vmul.f32 %v452, %v468
    %v485 = vmul.f32 %v453, %v469
    %v486 = vmul.f32 %v454, %v470
    %v487 = vmul.f32 %v455, %v471
    %v488 = vmul.f32 %v456, %v472
    %v489 = vmul.f32 %v457, %v473
    %v490 = vmul.f32 %v458, %v474
    %v491 = vmul.f32 %v459, %v475
    %v492 = vmul.f32 %v460, %v476
    %v493 = vmul.f32 %v461, %v477
    %v494 = vmul.f32 %v462, %v478
    %v495 = vmul.f32 %v463, %v479
    %v496 = vmul.f32 %v464, %v480
    %v497 = vmul.f32 %v465, %v481
    %v498 = vadd.f32 %v93, %v482
    %v499 = vadd.f32 %v94, %v483
    %v500 = vadd.f32 %v95, %v484
    %v501 = vadd.f32 %v96, %v485
    %v502 = vadd.f32 %v97, %v486
    %v503 = vadd.f32 %v98, %v487
    %v504 = vadd.f32 %v99, %v488
    %v505 = vadd.f32 %v100, %v489
    %v506 = vadd.f32 %v101, %v490
    %v507 = vadd.f32 %v102, %v491
    %v508 = vadd.f32 %v103, %v492
    %v509 = vadd.f32 %v104, %v493
    %v510 = vadd.f32 %v105, %v494
    %v511 = vadd.f32 %v106, %v495
    %v512 = vadd.f32 %v107, %v496
    %v513 = vadd.f32 %v108, %v497
    %v514 = vmul.f32 %v498, 2.0
    %v515 = vmul.f32 %v499, 2.0
    %v516 = vmul.f32 %v500, 2.0
    %v517 = vmul.f32 %v501, 2.0
    %v518 = vmul.f32 %v502, 2.0
    %v519 = vmul.f32 %v503, 2.0
    %v520 = vmul.f32 %v504, 2.0
    %v521 = vmul.f32 %v505, 2.0
    %v522 = vmul.f32 %v506, 2.0
    %v523 = vmul.f32 %v507, 2.0
    %v524 = vmul.f32 %v508, 2.0
    %v525 = vmul.f32 %v509, 2.0
    %v526 = vmul.f32 %v510, 2.0
    %v527 = vmul.f32 %v511, 2.0
    %v528 = vmul.f32 %v512, 2.0
    %v529 = vmul.f32 %v513, 2.0
    %530 = vst [vmem:[#allocation7] sm:$0xff] %v514
    %531 = vst [vmem:[#allocation7 + $0x8] sm:$0xff] %v515
    %532 = vst [vmem:[#allocation7 + $0x10] sm:$0xff] %v516
    %533 = vst [vmem:[#allocation7 + $0x18] sm:$0xff] %v517
    %534 = vst [vmem:[#allocation7 + $0x20] sm:$0xff] %v518
    %535 = vst [vmem:[#allocation7 + $0x28] sm:$0xff] %v519
    %536 = vst [vmem:[#allocation7 + $0x30] sm:$0xff] %v520
    %537 = vst [vmem:[#allocation7 + $0x38] sm:$0xff] %v521
    %538 = vst [vmem:[#allocation7 + $0x40] sm:$0xff] %v522
    %539 = vst [vmem:[#allocation7 + $0x48] sm:$0xff] %v523
    %540 = vst [vmem:[#allocation7 + $0x50] sm:$0xff] %v524
    %541 = vst [vmem:[#allocation7 + $0x58] sm:$0xff] %v525
    %542 = vst [vmem:[#allocation7 + $0x60] sm:$0xff] %v526
    %543 = vst [vmem:[#allocation7 + $0x68] sm:$0xff] %v527
    %544 = vst [vmem:[#allocation7 + $0x70] sm:$0xff] %v528
    %545 = vst [vmem:[#allocation7 + $0x78] sm:$0xff] %v529
    %s546 = scalar_lea.vmem [#allocation2], 128
    %v547 = vld [vmem:[%s546] sm:$0xff]
    %v548 = vld [vmem:[%s546 + $0x8] sm:$0xff]
    %v549 = vld [vmem:[%s546 + $0x10] sm:$0xff]
    %v550 = vld [vmem:[%s546 + $0x18] sm:$0xff]
    %v551 = vld [vmem:[%s546 + $0x20] sm:$0xff]
    %v552 = vld [vmem:[%s546 + $0x28] sm:$0xff]
    %v553 = vld [vmem:[%s546 + $0x30] sm:$0xff]
    %v554 = vld [vmem:[%s546 + $0x38] sm:$0xff]
    %v555 = vld [vmem:[%s546 + $0x40] sm:$0xff]
    %v556 = vld [vmem:[%s546 + $0x48] sm:$0xff]
    %v557 = vld [vmem:[%s546 + $0x50] sm:$0xff]
    %v558 = vld [vmem:[%s546 + $0x58] sm:$0xff]
    %v559 = vld [vmem:[%s546 + $0x60] sm:$0xff]
    %v560 = vld [vmem:[%s546 + $0x68] sm:$0xff]
    %v561 = vld [vmem:[%s546 + $0x70] sm:$0xff]
    %v562 = vld [vmem:[%s546 + $0x78] sm:$0xff]
    %s563 = scalar_lea.vmem [#allocation5], 128
    %v564 = vld [vmem:[%s563] sm:$0xff]
    %v565 = vld [vmem:[%s563 + $0x8] sm:$0xff]
    %v566 = vld [vmem:[%s563 + $0x10] sm:$0xff]
    %v567 = vld [vmem:[%s563 + $0x18] sm:$0xff]
    %v568 = vld [vmem:[%s563 + $0x20] sm:$0xff]
    %v569 = vld [vmem:[%s563 + $0x28] sm:$0xff]
    %v570 = vld [vmem:[%s563 + $0x30] sm:$0xff]
    %v571 = vld [vmem:[%s563 + $0x38] sm:$0xff]
    %v572 = vld [vmem:[%s563 + $0x40] sm:$0xff]
    %v573 = vld [vmem:[%s563 + $0x48] sm:$0xff]
    %v574 = vld [vmem:[%s563 + $0x50] sm:$0xff]
    %v575 = vld [vmem:[%s563 + $0x58] sm:$0xff]
    %v576 = vld [vmem:[%s563 + $0x60] sm:$0xff]
    %v577 = vld [vmem:[%s563 + $0x68] sm:$0xff]
    %v578 = vld [vmem:[%s563 + $0x70] sm:$0xff]
    %v579 = vld [vmem:[%s563 + $0x78] sm:$0xff]
    %v580 = vadd.f32 %v547, %v564
    %v581 = vadd.f32 %v548, %v565
    %v582 = vadd.f32 %v549, %v566
    %v583 = vadd.f32 %v550, %v567
    %v584 = vadd.f32 %v551, %v568
    %v585 = vadd.f32 %v552, %v569
    %v586 = vadd.f32 %v553, %v570
    %v587 = vadd.f32 %v554, %v571
    %v588 = vadd.f32 %v555, %v572
    %v589 = vadd.f32 %v556, %v573
    %v590 = vadd.f32 %v557, %v574
    %v591 = vadd.f32 %v558, %v575
    %v592 = vadd.f32 %v559, %v576
    %v593 = vadd.f32 %v560, %v577
    %v594 = vadd.f32 %v561, %v578
    %v595 = vadd.f32 %v562, %v579
    %v596 = vpack.c.bf16 %v582, %v580
    %v597 = vpack.c.bf16 %v583, %v581
    %v598 = vpack.c.bf16 %v586, %v584
    %v599 = vpack.c.bf16 %v587, %v585
    %v600 = vpack.c.bf16 %v590, %v588
    %v601 = vpack.c.bf16 %v591, %v589
    %v602 = vpack.c.bf16 %v594, %v592
    %v603 = vpack.c.bf16 %v595, %v593
    %604 = vmatprep.subr.bf16.mxu0 %v597
    %605 = vmatpush1.bf16.msra.mxu0 %v596
    %606 = vmatprep.subr.bf16.mxu0 %v599
    %607 = vmatpush1.bf16.msra.mxu0 %v598
    %608 = vmatprep.subr.bf16.mxu0 %v601
    %609 = vmatpush1.bf16.msra.mxu0 %v600
    %610 = vmatprep.subr.bf16.mxu0 %v603
    %611 = vmatpush1.bf16.msra.mxu0 %v602
    %612 = vmatprep.subr.bf16.mxu0 0
    %613 = vmatpush1.bf16.msra.mxu0 0
    %614 = vmatprep.subr.bf16.mxu0 0
    %615 = vmatpush1.bf16.msra.mxu0 0
    %616 = vmatprep.subr.bf16.mxu0 0
    %617 = vmatpush1.bf16.msra.mxu0 0
    %618 = vmatprep.subr.bf16.mxu0 0
    %619 = vmatpush1.bf16.msra.mxu0 0
    %620 = vmatprep.subr.bf16.mxu0 0
    %621 = vmatpush1.bf16.msra.mxu0 0
    %622 = vmatprep.subr.bf16.mxu0 0
    %623 = vmatpush1.bf16.msra.mxu0 0
    %624 = vmatprep.subr.bf16.mxu0 0
    %625 = vmatpush1.bf16.msra.mxu0 0
    %626 = vmatprep.subr.bf16.mxu0 0
    %627 = vmatpush1.bf16.msra.mxu0 0
    %628 = vmatprep.subr.bf16.mxu0 0
    %629 = vmatpush1.bf16.msra.mxu0 0
    %630 = vmatprep.subr.bf16.mxu0 0
    %631 = vmatpush1.bf16.msra.mxu0 0
    %632 = vmatprep.subr.bf16.mxu0 0
    %633 = vmatpush1.bf16.msra.mxu0 0
    %634 = vmatprep.subr.bf16.mxu0 0
    %635 = vmatpush1.bf16.msra.mxu0 0
    %636 = vmatprep.mubr.bf16.mxu0 0
    %637 = vmatmul.mubr.bf16.gmra.mrb[0].mxu0 %v165
    %v638 = vpop.f32.mrb[0].mxu0
    %v639 = vadd.f32 %v136, %v638
    %v640 = vpop.f32.mrb[0].mxu0
    %v641 = vadd.f32 %v136, %v640
    %v642 = vpop.f32.mrb[0].mxu0
    %v643 = vadd.f32 %v141, %v642
    %v644 = vpop.f32.mrb[0].mxu0
    %v645 = vadd.f32 %v141, %v644
    %646 = vmatprep.mubr.bf16.mxu0 0
    %647 = vmatmul.mubr.bf16.gmra.mrb[0].mxu0 %v168
    %v648 = vpop.f32.mrb[0].mxu0
    %v649 = vadd.f32 %v146, %v648
    %v650 = vpop.f32.mrb[0].mxu0
    %v651 = vadd.f32 %v146, %v650
    %v652 = vpop.f32.mrb[0].mxu0
    %v653 = vadd.f32 %v151, %v652
    %v654 = vpop.f32.mrb[0].mxu0
    %v655 = vadd.f32 %v151, %v654
    %656 = vdwg.mxu0
    %v657 = vmax.f32 %v639, 0.0
    %v658 = vmax.f32 %v641, 0.0
    %v659 = vmax.f32 %v643, 0.0
    %v660 = vmax.f32 %v645, 0.0
    %v661 = vadd.f32 %v649, %v651
    %662 = vadd.xlane.f32.xlu0 %v661
    %v663 = vpop.xlane.xlu0 %662
    %v664 = vadd.f32 %v653, %v655
    %665 = vadd.xlane.f32.xlu0 %v664
    %v666 = vpop.xlane.xlu0 %665
    %v667 = vmul.f32 %v663, 0.00390625
    %v668 = vmul.f32 %v666, 0.00390625
    %v669 = vmax.f32 %v667, 0.0
    %v670 = vmax.f32 %v668, 0.0
    %v671 = vpack.c.bf16 %v659, %v657
    %v672 = vpack.c.bf16 %v660, %v658
    %v673 = vpack.c.bf16 %v670, %v669
    %674 = vmatprep.subr.bf16.mxu0 %v672
    %675 = vmatpush1.bf16.msra.mxu0 %v671
    %676 = vmatprep.subr.bf16.mxu0 %v673
    %677 = vmatpush1.bf16.msra.mxu0 %v673
    %678 = vmatprep.subr.bf16.mxu0 0
    %679 = vmatpush1.bf16.msra.mxu0 0
    %680 = vmatprep.subr.bf16.mxu0 0
    %681 = vmatpush1.bf16.msra.mxu0 0
    %682 = vmatprep.subr.bf16.mxu0 0
    %683 = vmatpush1.bf16.msra.mxu0 0
    %684 = vmatprep.subr.bf16.mxu0 0
    %685 = vmatpush1.bf16.msra.mxu0 0
    %686 = vmatprep.subr.bf16.mxu0 0
    %687 = vmatpush1.bf16.msra.mxu0 0
    %688 = vmatprep.subr.bf16.mxu0 0
    %689 = vmatpush1.bf16.msra.mxu0 0
    %690 = vmatprep.subr.bf16.mxu0 0
    %691 = vmatpush1.bf16.msra.mxu0 0
    %692 = vmatprep.subr.bf16.mxu0 0
    %693 = vmatpush1.bf16.msra.mxu0 0
    %694 = vmatprep.subr.bf16.mxu0 0
    %695 = vmatpush1.bf16.msra.mxu0 0
    %696 = vmatprep.subr.bf16.mxu0 0
    %697 = vmatpush1.bf16.msra.mxu0 0
    %698 = vmatprep.subr.bf16.mxu0 0
    %699 = vmatpush1.bf16.msra.mxu0 0
    %700 = vmatprep.subr.bf16.mxu0 0
    %701 = vmatpush1.bf16.msra.mxu0 0
    %702 = vmatprep.subr.bf16.mxu0 0
    %703 = vmatpush1.bf16.msra.mxu0 0
    %704 = vmatprep.subr.bf16.mxu0 0
    %705 = vmatpush1.bf16.msra.mxu0 0
    %706 = vmatprep.mubr.bf16.mxu0 0
    %707 = vmatmul.mubr.bf16.gmra.mrb[0].mxu0 %v302
    %v708 = vpop.f32.mrb[0].mxu0
    %v709 = vadd.f32 %v243, %v708
    %v710 = vpop.f32.mrb[0].mxu0
    %v711 = vadd.f32 %v243, %v710
    %v712 = vpop.f32.mrb[0].mxu0
    %v713 = vadd.f32 %v248, %v712
    %v714 = vpop.f32.mrb[0].mxu0
    %v715 = vadd.f32 %v248, %v714
    %716 = vmatprep.mubr.bf16.mxu0 0
    %717 = vmatmul.mubr.bf16.gmra.mrb[0].mxu0 %v305
    %v718 = vpop.f32.mrb[0].mxu0
    %v719 = vadd.f32 %v253, %v718
    %v720 = vpop.f32.mrb[0].mxu0
    %v721 = vadd.f32 %v253, %v720
    %v722 = vpop.f32.mrb[0].mxu0
    %v723 = vadd.f32 %v258, %v722
    %v724 = vpop.f32.mrb[0].mxu0
    %v725 = vadd.f32 %v258, %v724
    %726 = vmatprep.mubr.bf16.mxu0 0
    %727 = vmatmul.mubr.bf16.gmra.mrb[0].mxu0 %v308
    %v728 = vpop.f32.mrb[0].mxu0
    %v729 = vadd.f32 %v263, %v728
    %v730 = vpop.f32.mrb[0].mxu0
    %v731 = vadd.f32 %v263, %v730
    %v732 = vpop.f32.mrb[0].mxu0
    %v733 = vadd.f32 %v268, %v732
    %v734 = vpop.f32.mrb[0].mxu0
    %v735 = vadd.f32 %v268, %v734
    %736 = vmatprep.mubr.bf16.mxu0 0
    %737 = vmatmul.mubr.bf16.gmra.mrb[0].mxu0 %v311
    %v738 = vpop.f32.mrb[0].mxu0
    %v739 = vadd.f32 %v273, %v738
    %v740 = vpop.f32.mrb[0].mxu0
    %v741 = vadd.f32 %v273, %v740
    %v742 = vpop.f32.mrb[0].mxu0
    %v743 = vadd.f32 %v278, %v742
    %v744 = vpop.f32.mrb[0].mxu0
    %v745 = vadd.f32 %v278, %v744
    %746 = vdwg.mxu0
    %v747 = vsub.f32 0.0, %v709
    %v748 = vsub.f32 0.0, %v711
    %v749 = vsub.f32 0.0, %v713
    %v750 = vsub.f32 0.0, %v715
    %v751 = vsub.f32 0.0, %v719
    %v752 = vsub.f32 0.0, %v721
    %v753 = vsub.f32 0.0, %v723
    %v754 = vsub.f32 0.0, %v725
    %v755 = vsub.f32 0.0, %v729
    %v756 = vsub.f32 0.0, %v731
    %v757 = vsub.f32 0.0, %v733
    %v758 = vsub.f32 0.0, %v735
    %v759 = vsub.f32 0.0, %v739
    %v760 = vsub.f32 0.0, %v741
    %v761 = vsub.f32 0.0, %v743
    %v762 = vsub.f32 0.0, %v745
    %v763 = vmul.f32 %v747, 1.442695
    %v764 = vpow.pop %v763
    %v765 = vmul.f32 %v748, 1.442695
    %v766 = vpow.pop %v765
    %v767 = vmul.f32 %v749, 1.442695
    %v768 = vpow.pop %v767
    %v769 = vmul.f32 %v750, 1.442695
    %v770 = vpow.pop %v769
    %v771 = vmul.f32 %v751, 1.442695
    %v772 = vpow.pop %v771
    %v773 = vmul.f32 %v752, 1.442695
    %v774 = vpow.pop %v773
    %v775 = vmul.f32 %v753, 1.442695
    %v776 = vpow.pop %v775
    %v777 = vmul.f32 %v754, 1.442695
    %v778 = vpow.pop %v777
    %v779 = vmul.f32 %v755, 1.442695
    %v780 = vpow.pop %v779
    %v781 = vmul.f32 %v756, 1.442695
    %v782 = vpow.pop %v781
    %v783 = vmul.f32 %v757, 1.442695
    %v784 = vpow.pop %v783
    %v785 = vmul.f32 %v758, 1.442695
    %v786 = vpow.pop %v785
    %v787 = vmul.f32 %v759, 1.442695
    %v788 = vpow.pop %v787
    %v789 = vmul.f32 %v760, 1.442695
    %v790 = vpow.pop %v789
    %v791 = vmul.f32 %v761, 1.442695
    %v792 = vpow.pop %v791
    %v793 = vmul.f32 %v762, 1.442695
    %v794 = vpow.pop %v793
    %v795 = vadd.f32 %v764, 1.0
    %v796 = vadd.f32 %v766, 1.0
    %v797 = vadd.f32 %v768, 1.0
    %v798 = vadd.f32 %v770, 1.0
    %v799 = vadd.f32 %v772, 1.0
    %v800 = vadd.f32 %v774, 1.0
    %v801 = vadd.f32 %v776, 1.0
    %v802 = vadd.f32 %v778, 1.0
    %v803 = vadd.f32 %v780, 1.0
    %v804 = vadd.f32 %v782, 1.0
    %v805 = vadd.f32 %v784, 1.0
    %v806 = vadd.f32 %v786, 1.0
    %v807 = vadd.f32 %v788, 1.0
    %v808 = vadd.f32 %v790, 1.0
    %v809 = vadd.f32 %v792, 1.0
    %v810 = vadd.f32 %v794, 1.0
    %v811 = vrcp.pop %v795
    %v812 = vrcp.pop %v796
    %v813 = vrcp.pop %v797
    %v814 = vrcp.pop %v798
    %v815 = vrcp.pop %v799
    %v816 = vrcp.pop %v800
    %v817 = vrcp.pop %v801
    %v818 = vrcp.pop %v802
    %v819 = vrcp.pop %v803
    %v820 = vrcp.pop %v804
    %v821 = vrcp.pop %v805
    %v822 = vrcp.pop %v806
    %v823 = vrcp.pop %v807
    %v824 = vrcp.pop %v808
    %v825 = vrcp.pop %v809
    %v826 = vrcp.pop %v810
    %v827 = vsub.f32 %v547, %v564
    %v828 = vsub.f32 %v548, %v565
    %v829 = vsub.f32 %v549, %v566
    %v830 = vsub.f32 %v550, %v567
    %v831 = vsub.f32 %v551, %v568
    %v832 = vsub.f32 %v552, %v569
    %v833 = vsub.f32 %v553, %v570
    %v834 = vsub.f32 %v554, %v571
    %v835 = vsub.f32 %v555, %v572
    %v836 = vsub.f32 %v556, %v573
    %v837 = vsub.f32 %v557, %v574
    %v838 = vsub.f32 %v558, %v575
    %v839 = vsub.f32 %v559, %v576
    %v840 = vsub.f32 %v560, %v577
    %v841 = vsub.f32 %v561, %v578
    %v842 = vsub.f32 %v562, %v579
    %v843 = vmul.f32 %v811, %v827
    %v844 = vmul.f32 %v812, %v828
    %v845 = vmul.f32 %v813, %v829
    %v846 = vmul.f32 %v814, %v830
    %v847 = vmul.f32 %v815, %v831
    %v848 = vmul.f32 %v816, %v832
    %v849 = vmul.f32 %v817, %v833
    %v850 = vmul.f32 %v818, %v834
    %v851 = vmul.f32 %v819, %v835
    %v852 = vmul.f32 %v820, %v836
    %v853 = vmul.f32 %v821, %v837
    %v854 = vmul.f32 %v822, %v838
    %v855 = vmul.f32 %v823, %v839
    %v856 = vmul.f32 %v824, %v840
    %v857 = vmul.f32 %v825, %v841
    %v858 = vmul.f32 %v826, %v842
    %v859 = vadd.f32 %v564, %v843
    %v860 = vadd.f32 %v565, %v844
    %v861 = vadd.f32 %v566, %v845
    %v862 = vadd.f32 %v567, %v846
    %v863 = vadd.f32 %v568, %v847
    %v864 = vadd.f32 %v569, %v848
    %v865 = vadd.f32 %v570, %v849
    %v866 = vadd.f32 %v571, %v850
    %v867 = vadd.f32 %v572, %v851
    %v868 = vadd.f32 %v573, %v852
    %v869 = vadd.f32 %v574, %v853
    %v870 = vadd.f32 %v575, %v854
    %v871 = vadd.f32 %v576, %v855
    %v872 = vadd.f32 %v577, %v856
    %v873 = vadd.f32 %v578, %v857
    %v874 = vadd.f32 %v579, %v858
    %v875 = vmul.f32 %v859, 2.0
    %v876 = vmul.f32 %v860, 2.0
    %v877 = vmul.f32 %v861, 2.0
    %v878 = vmul.f32 %v862, 2.0
    %v879 = vmul.f32 %v863, 2.0
    %v880 = vmul.f32 %v864, 2.0
    %v881 = vmul.f32 %v865, 2.0
    %v882 = vmul.f32 %v866, 2.0
    %v883 = vmul.f32 %v867, 2.0
    %v884 = vmul.f32 %v868, 2.0
    %v885 = vmul.f32 %v869, 2.0
    %v886 = vmul.f32 %v870, 2.0
    %v887 = vmul.f32 %v871, 2.0
    %v888 = vmul.f32 %v872, 2.0
    %v889 = vmul.f32 %v873, 2.0
    %v890 = vmul.f32 %v874, 2.0
    %s891 = scalar_lea.vmem [#allocation7], 128
    %892 = vst [vmem:[%s891] sm:$0xff] %v875
    %893 = vst [vmem:[%s891 + $0x8] sm:$0xff] %v876
    %894 = vst [vmem:[%s891 + $0x10] sm:$0xff] %v877
    %895 = vst [vmem:[%s891 + $0x18] sm:$0xff] %v878
    %896 = vst [vmem:[%s891 + $0x20] sm:$0xff] %v879
    %897 = vst [vmem:[%s891 + $0x28] sm:$0xff] %v880
    %898 = vst [vmem:[%s891 + $0x30] sm:$0xff] %v881
    %899 = vst [vmem:[%s891 + $0x38] sm:$0xff] %v882
    %900 = vst [vmem:[%s891 + $0x40] sm:$0xff] %v883
    %901 = vst [vmem:[%s891 + $0x48] sm:$0xff] %v884
    %902 = vst [vmem:[%s891 + $0x50] sm:$0xff] %v885
    %903 = vst [vmem:[%s891 + $0x58] sm:$0xff] %v886
    %904 = vst [vmem:[%s891 + $0x60] sm:$0xff] %v887
    %905 = vst [vmem:[%s891 + $0x68] sm:$0xff] %v888
    %906 = vst [vmem:[%s891 + $0x70] sm:$0xff] %v889
    %907 = vst [vmem:[%s891 + $0x78] sm:$0xff] %v890
    // Predicated region
    $region34: #{tpu_custom_call.1} parent=1 // pred_check
      _
    $region35: #{tpu_custom_call.1} parent=1 // pred_check_branch
      %909 = sbr.rel (0) target = $region37
    $region36: #{tpu_custom_call.1} parent=1 // pred_region
      %s911 = ssub.s32 4096, 4096
      %912 = vsyncadd [#allocation4], %s911
      %s913 = sshll.u32 [#allocation7], 4
      %s914 = int_to_ptr.vmem [resolvable:$true] %s913
      %919 = dma.vmem_to_hbm [thread:$0]  %s914, 4096, %s6, [#allocation4], 256, 256, 16
    $region37: #{tpu_custom_call.1} parent=1 // pred_fallthru
      _
    // Predicated region
    $region38: #{tpu_custom_call.1} parent=1 // pred_check
      _
    $region39: #{tpu_custom_call.1} parent=1 // pred_check_branch
      %921 = sbr.rel (0) target = $region41
    $region40: #{tpu_custom_call.1} parent=1 // pred_region
      %922 = dma.done [#allocation4], 4096
    $region41: #{tpu_custom_call.1} parent=1 // pred_fallthru
      _
    %923 = vsyncpa [#allocation3], 1
    %924 = vsyncpa [#allocation6], 1
    %925 = vsyncpa [#allocation4], 1

</llo_original>
